<compile_context>
chip_gen: v7x
topology: tpu7x:2x2x1
jax: 0.10.0
libtpu: 0.0.40
codegen_flags: <defaults>
</compile_context>

<pallas_src>
import jax
import jax.numpy as jnp
from jax.experimental import pallas as pl
from jax.experimental.pallas import tpu as pltpu


_MAX_TILE_B = 4096  # rows per grid step (multiple of 8 and 128)


def qvalue_kernel(s_ref, a_ref, w1s_ref, w1a_ref, b1_ref, w2_ref, b2_ref,
                  w3_ref, b3_ref, o_ref):
    """One batch tile: fused concat + two ReLU layers + linear head."""
    # Layer 1 with the concat fused:  h1 = relu(s @ W1_s + a @ W1_a + b1)
    h1 = jnp.dot(s_ref[...], w1s_ref[...], preferred_element_type=jnp.float32)
    h1 = h1 + jnp.dot(a_ref[...], w1a_ref[...], preferred_element_type=jnp.float32)
    h1 = jnp.maximum(h1 + b1_ref[...], 0.0)
    # Layer 2:  h2 = relu(h1 @ W2 + b2)
    h2 = jnp.dot(h1, w2_ref[...], preferred_element_type=jnp.float32)
    h2 = jnp.maximum(h2 + b2_ref[...], 0.0)
    # Head (H -> 1) on the VPU + lane reduction (skips an N=1 MXU matmul).
    q = jnp.sum(h2 * w3_ref[...], axis=-1, keepdims=True) + b3_ref[...]
    o_ref[...] = q


def _round_up(x, m):
    return (x + m - 1) // m * m


@jax.jit
def qvalue_forward(s, a, params):
    """q(s, a) for the SAC critic.  s: (B, n_in) f32, a: (B, n_acs) f32."""
    w1s, w1a, b1, w2, b2, w3, b3 = params
    B, n_in = s.shape
    n_acs = a.shape[1]
    hidden = w2.shape[0]

    # Batch tiling: large tiles for real replay batches, but never bigger than
    # the (128-aligned) batch itself for tiny calls.
    tile_b = min(_MAX_TILE_B, _round_up(max(B, 1), 128))
    b_pad = _round_up(B, tile_b)
    if b_pad != B:
        s = jnp.pad(s, ((0, b_pad - B), (0, 0)))
        a = jnp.pad(a, ((0, b_pad - B), (0, 0)))
    grid = (b_pad // tile_b,)

    def stream(shape):        # batch-tiled, pipelined through VMEM
        return pl.BlockSpec(shape, lambda i: (i, 0))

    def resident(shape):      # weights/biases: same block every step
        return pl.BlockSpec(shape, lambda i: (0, 0))

    out = pl.pallas_call(
        qvalue_kernel,
        out_shape=jax.ShapeDtypeStruct((b_pad, 1), jnp.float32),
        grid=grid,
        in_specs=[
            stream((tile_b, n_in)),       # s
            stream((tile_b, n_acs)),      # a
            resident((n_in, hidden)),     # W1_s
            resident((n_acs, hidden)),    # W1_a
            resident((1, hidden)),        # b1
            resident((hidden, hidden)),   # W2
            resident((1, hidden)),        # b2
            resident((1, hidden)),        # w3 (row vector)
            resident((1, 1)),             # b3
        ],
        out_specs=stream((tile_b, 1)),
        compiler_params=pltpu.CompilerParams(
            dimension_semantics=("parallel",),      # megacore / v7x 2-TC sharding
            vmem_limit_bytes=48 * 1024 * 1024,      # fits v7x's 64 MiB VMEM w/ headroom
        ),
    )(s, a, w1s, w1a, b1, w2, b2, w3, b3)
    return out[:B]


def init_params(key, n_in, n_acs, hidden):
    """PyTorch-default init for hidden layers; uniform(-3e-3, 3e-3) head.

    Weights are stored transposed as (in, out) and W1 is pre-split into its
    s-part and a-part so the kernel can fuse torch.cat([s, a], dim=1).
    """
    k1, k2, k3, k4, k5, k6 = jax.random.split(key, 6)
    d_in = n_in + n_acs

    def torch_linear(kw, kb, fan_in, fan_out):
        bound = 1.0 / jnp.sqrt(jnp.float32(fan_in))
        w = jax.random.uniform(kw, (fan_in, fan_out), jnp.float32, -bound, bound)
        b = jax.random.uniform(kb, (1, fan_out), jnp.float32, -bound, bound)
        return w, b

    w1, b1 = torch_linear(k1, k2, d_in, hidden)
    w1s, w1a = w1[:n_in], w1[n_in:]     # split along the concat dimension
    w2, b2 = torch_linear(k3, k4, hidden, hidden)
    # final layer: uniform_(-0.003, 0.003) on both weight and bias
    w3 = jax.random.uniform(k5, (1, hidden), jnp.float32, -0.003, 0.003)
    b3 = jax.random.uniform(k6, (1, 1), jnp.float32, -0.003, 0.003)
    return (w1s, w1a, b1, w2, b2, w3, b3)


def qvalue_reference(s, a, params):
    """Pure-JAX reference matching the PyTorch forward (explicit concat)."""
    w1s, w1a, b1, w2, b2, w3, b3 = params
    x = jnp.concatenate([s, a], axis=1)              # torch.cat([s, a], dim=1)
    w1 = jnp.concatenate([w1s, w1a], axis=0)
    h1 = jnp.maximum(x @ w1 + b1, 0.0)
    h2 = jnp.maximum(h1 @ w2 + b2, 0.0)
    return h2 @ w3.T + b3


if __name__ == "__main__":
    # FetchPush-v1: observation dim 25 + achieved_goal dim 3 => n_in = 28; n_acs = 4.
    B, N_IN, N_ACS, HIDDEN = 8, 28, 4, 32

    key = jax.random.PRNGKey(0)
    ks, ka, kp = jax.random.split(key, 3)
    s = jax.random.normal(ks, (B, N_IN), dtype=jnp.float32)
    a = jax.random.normal(ka, (B, N_ACS), dtype=jnp.float32)
    params = init_params(kp, N_IN, N_ACS, HIDDEN)

    q = qvalue_forward(s, a, params)
    q = jax.block_until_ready(q)

    q_ref = qvalue_reference(s, a, params)
    assert q.shape == (B, 1), q.shape
    assert jnp.allclose(q, q_ref, atol=1e-5, rtol=1e-5), (q, q_ref)

    print("KERNEL_OK")
</pallas_src>

<mosaic_0001>
module attributes {stable_mosaic.version = 11 : i64} {
  func.func @qvalue_kernel(%arg0: i32, %arg1: memref<128x28xf32, #tpu.memory_space<vmem>>, %arg2: memref<128x4xf32, #tpu.memory_space<vmem>>, %arg3: memref<28x32xf32, #tpu.memory_space<vmem>>, %arg4: memref<4x32xf32, #tpu.memory_space<vmem>>, %arg5: memref<1x32xf32, #tpu.memory_space<vmem>>, %arg6: memref<32x32xf32, #tpu.memory_space<vmem>>, %arg7: memref<1x32xf32, #tpu.memory_space<vmem>>, %arg8: memref<1x32xf32, #tpu.memory_space<vmem>>, %arg9: memref<1x1xf32, #tpu.memory_space<vmem>>, %arg10: memref<128x1xf32, #tpu.memory_space<vmem>>) attributes {dimension_semantics = [#tpu.dimension_semantics<parallel>], iteration_bounds = array<i64: 1>, scalar_prefetch = 0 : i64, scratch_operands = 0 : i64, tpu.core_type = #tpu.core_type<tc>, window_params = [{transform_indices = @transform_0, window_bounds = array<i64: 128, 28>}, {transform_indices = @transform_1, window_bounds = array<i64: 128, 4>}, {pipeline_mode = #tpu.pipeline_mode<synchronous>, transform_indices = @transform_2, window_bounds = array<i64: 28, 32>}, {pipeline_mode = #tpu.pipeline_mode<synchronous>, transform_indices = @transform_3, window_bounds = array<i64: 4, 32>}, {pipeline_mode = #tpu.pipeline_mode<synchronous>, transform_indices = @transform_4, window_bounds = array<i64: 1, 32>}, {pipeline_mode = #tpu.pipeline_mode<synchronous>, transform_indices = @transform_5, window_bounds = array<i64: 32, 32>}, {pipeline_mode = #tpu.pipeline_mode<synchronous>, transform_indices = @transform_6, window_bounds = array<i64: 1, 32>}, {pipeline_mode = #tpu.pipeline_mode<synchronous>, transform_indices = @transform_7, window_bounds = array<i64: 1, 32>}, {pipeline_mode = #tpu.pipeline_mode<synchronous>, transform_indices = @transform_8, window_bounds = array<i64: 1, 1>}, {transform_indices = @transform_9, window_bounds = array<i64: 128, 1>}]} {
    %c0 = arith.constant 0 : index
    %c0_0 = arith.constant 0 : index
    %0 = vector.load %arg1[%c0, %c0_0] : memref<128x28xf32, #tpu.memory_space<vmem>>, vector<128x28xf32>
    %c0_1 = arith.constant 0 : index
    %c0_2 = arith.constant 0 : index
    %1 = vector.load %arg3[%c0_1, %c0_2] : memref<28x32xf32, #tpu.memory_space<vmem>>, vector<28x32xf32>
    %cst = arith.constant dense<0.000000e+00> : vector<128x32xf32>
    %2 = tpu.matmul %0, %1, %cst {dimension_numbers = #tpu.dot_dimension_numbers<[1], [0], [0], [1], [0, 0, 1, 1], [], []>} : vector<128x28xf32>, vector<28x32xf32>, vector<128x32xf32> -> vector<128x32xf32>
    %c0_3 = arith.constant 0 : index
    %c0_4 = arith.constant 0 : index
    %3 = vector.load %arg2[%c0_3, %c0_4] : memref<128x4xf32, #tpu.memory_space<vmem>>, vector<128x4xf32>
    %c0_5 = arith.constant 0 : index
    %c0_6 = arith.constant 0 : index
    %4 = vector.load %arg4[%c0_5, %c0_6] : memref<4x32xf32, #tpu.memory_space<vmem>>, vector<4x32xf32>
    %cst_7 = arith.constant dense<0.000000e+00> : vector<128x32xf32>
    %5 = tpu.matmul %3, %4, %cst_7 {dimension_numbers = #tpu.dot_dimension_numbers<[1], [0], [0], [1], [0, 0, 1, 1], [], []>} : vector<128x4xf32>, vector<4x32xf32>, vector<128x32xf32> -> vector<128x32xf32>
    %6 = arith.addf %2, %5 : vector<128x32xf32>
    %c0_8 = arith.constant 0 : index
    %c0_9 = arith.constant 0 : index
    %7 = vector.load %arg5[%c0_8, %c0_9] : memref<1x32xf32, #tpu.memory_space<vmem>>, vector<1x32xf32>
    %8 = vector.broadcast %7 : vector<1x32xf32> to vector<128x32xf32>
    %9 = arith.addf %6, %8 : vector<128x32xf32>
    %cst_10 = arith.constant 0.000000e+00 : f32
    %10 = vector.broadcast %cst_10 : f32 to vector<128x32xf32>
    %11 = arith.maximumf %9, %10 : vector<128x32xf32>
    %c0_11 = arith.constant 0 : index
    %c0_12 = arith.constant 0 : index
    %12 = vector.load %arg6[%c0_11, %c0_12] : memref<32x32xf32, #tpu.memory_space<vmem>>, vector<32x32xf32>
    %cst_13 = arith.constant dense<0.000000e+00> : vector<128x32xf32>
    %13 = tpu.matmul %11, %12, %cst_13 {dimension_numbers = #tpu.dot_dimension_numbers<[1], [0], [0], [1], [0, 0, 1, 1], [], []>} : vector<128x32xf32>, vector<32x32xf32>, vector<128x32xf32> -> vector<128x32xf32>
    %c0_14 = arith.constant 0 : index
    %c0_15 = arith.constant 0 : index
    %14 = vector.load %arg7[%c0_14, %c0_15] : memref<1x32xf32, #tpu.memory_space<vmem>>, vector<1x32xf32>
    %15 = vector.broadcast %14 : vector<1x32xf32> to vector<128x32xf32>
    %16 = arith.addf %13, %15 : vector<128x32xf32>
    %cst_16 = arith.constant 0.000000e+00 : f32
    %17 = vector.broadcast %cst_16 : f32 to vector<128x32xf32>
    %18 = arith.maximumf %16, %17 : vector<128x32xf32>
    %c0_17 = arith.constant 0 : index
    %c0_18 = arith.constant 0 : index
    %19 = vector.load %arg8[%c0_17, %c0_18] : memref<1x32xf32, #tpu.memory_space<vmem>>, vector<1x32xf32>
    %20 = vector.broadcast %19 : vector<1x32xf32> to vector<128x32xf32>
    %21 = arith.mulf %18, %20 : vector<128x32xf32>
    %cst_19 = arith.constant dense<0.000000e+00> : vector<128xf32>
    %22 = vector.multi_reduction <add>, %21, %cst_19 [1] : vector<128x32xf32> to vector<128xf32>
    %23 = vector.shape_cast %22 : vector<128xf32> to vector<128x1xf32>
    %c0_20 = arith.constant 0 : index
    %c0_21 = arith.constant 0 : index
    %24 = vector.load %arg9[%c0_20, %c0_21] : memref<1x1xf32, #tpu.memory_space<vmem>>, vector<1x1xf32>
    %25 = vector.broadcast %24 : vector<1x1xf32> to vector<128x1xf32>
    %26 = arith.addf %23, %25 : vector<128x1xf32>
    %c0_22 = arith.constant 0 : index
    %c0_23 = arith.constant 0 : index
    %27 = vector.load %arg10[%c0_22, %c0_23] : memref<128x1xf32, #tpu.memory_space<vmem>>, vector<128x1xf32>
    tpu.vector_store %arg10[%c0_22, %c0_23], %26 {strides = array<i32>} : memref<128x1xf32, #tpu.memory_space<vmem>>, vector<128x1xf32>,
    return
  }
  func.func @transform_0(%arg0: i32) -> (i32, i32) {
    %c0_i32 = arith.constant 0 : i32
    %c0_i32_0 = arith.constant 0 : i32
    return %arg0, %c0_i32 : i32, i32
  }
  func.func @transform_1(%arg0: i32) -> (i32, i32) {
    %c0_i32 = arith.constant 0 : i32
    %c0_i32_0 = arith.constant 0 : i32
    return %arg0, %c0_i32 : i32, i32
  }
  func.func @transform_2(%arg0: i32) -> (i32, i32) {
    %c0_i32 = arith.constant 0 : i32
    %c0_i32_0 = arith.constant 0 : i32
    %c0_i32_1 = arith.constant 0 : i32
    return %c0_i32, %c0_i32_0 : i32, i32
  }
  func.func @transform_3(%arg0: i32) -> (i32, i32) {
    %c0_i32 = arith.constant 0 : i32
    %c0_i32_0 = arith.constant 0 : i32
    %c0_i32_1 = arith.constant 0 : i32
    return %c0_i32, %c0_i32_0 : i32, i32
  }
  func.func @transform_4(%arg0: i32) -> (i32, i32) {
    %c0_i32 = arith.constant 0 : i32
    %c0_i32_0 = arith.constant 0 : i32
    %c0_i32_1 = arith.constant 0 : i32
    return %c0_i32, %c0_i32_0 : i32, i32
  }
  func.func @transform_5(%arg0: i32) -> (i32, i32) {
    %c0_i32 = arith.constant 0 : i32
    %c0_i32_0 = arith.constant 0 : i32
    %c0_i32_1 = arith.constant 0 : i32
    return %c0_i32, %c0_i32_0 : i32, i32
  }
  func.func @transform_6(%arg0: i32) -> (i32, i32) {
    %c0_i32 = arith.constant 0 : i32
    %c0_i32_0 = arith.constant 0 : i32
    %c0_i32_1 = arith.constant 0 : i32
    return %c0_i32, %c0_i32_0 : i32, i32
  }
  func.func @transform_7(%arg0: i32) -> (i32, i32) {
    %c0_i32 = arith.constant 0 : i32
    %c0_i32_0 = arith.constant 0 : i32
    %c0_i32_1 = arith.constant 0 : i32
    return %c0_i32, %c0_i32_0 : i32, i32
  }
  func.func @transform_8(%arg0: i32) -> (i32, i32) {
    %c0_i32 = arith.constant 0 : i32
    %c0_i32_0 = arith.constant 0 : i32
    %c0_i32_1 = arith.constant 0 : i32
    return %c0_i32, %c0_i32_0 : i32, i32
  }
  func.func @transform_9(%arg0: i32) -> (i32, i32) {
    %c0_i32 = arith.constant 0 : i32
    %c0_i32_0 = arith.constant 0 : i32
    return %arg0, %c0_i32 : i32, i32
  }
}

</mosaic_0001>

<llo_original>
// kernel: qvalue_forward.1
$region0: #{qvalue_forward.1}
  #allocation0 [shape = 'u32[]', space=smem, size = 0x4, offset = 0x4, fixed_abs, tag = 'smem constant byte address 0x4 - core index']
  #allocation1 [shape = 'u32[144,128]{1,0:T(1,128)}', space=vmem, size = 0x12000, scoped, tag = 'internal scratch']
  #allocation2 [shape = 'f32[1,1]{1,0:T(1,128)S(1)}', space=vmem, size = 0x200, scoped, tag = 'scoped memory for qvalue_forward.1']
  %s0 = inlined_call_operand.vmem [shape: f32[128,28], index: 0, kind: input, shape index: {}]
  %s1 = inlined_call_operand.vmem [shape: f32[128,4], index: 1, kind: input, shape index: {}]
  %s2 = inlined_call_operand.vmem [shape: f32[28,32], index: 2, kind: input, shape index: {}]
  %s3 = inlined_call_operand.vmem [shape: f32[4,32], index: 3, kind: input, shape index: {}]
  %s4 = inlined_call_operand.vmem [shape: f32[1,32], index: 4, kind: input, shape index: {}]
  %s5 = inlined_call_operand.vmem [shape: f32[32,32], index: 5, kind: input, shape index: {}]
  %s6 = inlined_call_operand.vmem [shape: f32[1,32], index: 6, kind: input, shape index: {}]
  %s7 = inlined_call_operand.vmem [shape: f32[1,32], index: 7, kind: input, shape index: {}]
  %s8 = inlined_call_operand.<no memory space> [shape: f32[1,1], index: 8, kind: input, shape index: {}]
  %s9 = inlined_call_operand.vmem [shape: f32[128,1], index: 9, kind: output, shape index: {}]
  %s10 = sld [smem:[#allocation0]]
  $region46: #{qvalue_forward.1} parent=0
    _
  %s12 = ssub.s32 1, %s10
  %s13 = scalar_select 0, %s12, %s10
  %v14 = vstv %s8
  %15 = vst [vmem:[#allocation2] sm:$0x1] %v14
  // Predicated region
  $region2: #{qvalue_forward.1} parent=0 // pred_check
    _
  $region3: #{qvalue_forward.1} parent=0 // pred_check_branch
    %17 = sbr.rel (0) target = $region5
  $region4: #{qvalue_forward.1} parent=0 // pred_region
    _
  $region5: #{qvalue_forward.1} parent=0 // pred_fallthru
    _
  // Predicated region
  $region6: #{qvalue_forward.1} parent=0 // pred_check
    _
  $region7: #{qvalue_forward.1} parent=0 // pred_check_branch
    %19 = sbr.rel (0) target = $region9
  $region8: #{qvalue_forward.1} parent=0 // pred_region
    _
  $region9: #{qvalue_forward.1} parent=0 // pred_fallthru
    _
  // Predicated region
  $region10: #{qvalue_forward.1} parent=0 // pred_check
    _
  $region11: #{qvalue_forward.1} parent=0 // pred_check_branch
    %21 = sbr.rel (0) target = $region13
  $region12: #{qvalue_forward.1} parent=0 // pred_region
    _
  $region13: #{qvalue_forward.1} parent=0 // pred_fallthru
    _
  // Predicated region
  $region14: #{qvalue_forward.1} parent=0 // pred_check
    _
  $region15: #{qvalue_forward.1} parent=0 // pred_check_branch
    %23 = sbr.rel (0) target = $region17
  $region16: #{qvalue_forward.1} parent=0 // pred_region
    _
  $region17: #{qvalue_forward.1} parent=0 // pred_fallthru
    _
  // Predicated region
  $region18: #{qvalue_forward.1} parent=0 // pred_check
    _
  $region19: #{qvalue_forward.1} parent=0 // pred_check_branch
    %25 = sbr.rel (0) target = $region21
  $region20: #{qvalue_forward.1} parent=0 // pred_region
    _
  $region21: #{qvalue_forward.1} parent=0 // pred_fallthru
    _
  // Predicated region
  $region22: #{qvalue_forward.1} parent=0 // pred_check
    _
  $region23: #{qvalue_forward.1} parent=0 // pred_check_branch
    %27 = sbr.rel (0) target = $region25
  $region24: #{qvalue_forward.1} parent=0 // pred_region
    _
  $region25: #{qvalue_forward.1} parent=0 // pred_fallthru
    _
  // Predicated region
  $region26: #{qvalue_forward.1} parent=0 // pred_check
    _
  $region27: #{qvalue_forward.1} parent=0 // pred_check_branch
    %29 = sbr.rel (0) target = $region29
  $region28: #{qvalue_forward.1} parent=0 // pred_region
    _
  $region29: #{qvalue_forward.1} parent=0 // pred_fallthru
    _
  // Predicated region
  $region30: #{qvalue_forward.1} parent=0 // pred_check
    _
  $region31: #{qvalue_forward.1} parent=0 // pred_check_branch
    %31 = sbr.rel (0) target = $region33
  $region32: #{qvalue_forward.1} parent=0 // pred_region
    _
  $region33: #{qvalue_forward.1} parent=0 // pred_fallthru
    _
  // Predicated region
  $region34: #{qvalue_forward.1} parent=0 // pred_check
    _
  $region35: #{qvalue_forward.1} parent=0 // pred_check_branch
    %33 = sbr.rel (0) target = $region37
  $region36: #{qvalue_forward.1} parent=0 // pred_region
    _
  $region37: #{qvalue_forward.1} parent=0 // pred_fallthru
    _
  %v34 = vld [vmem:[%s0] sm:$0xff]
  %v35 = vld [vmem:[%s0 + $0x8] sm:$0xff]
  %v36 = vld [vmem:[%s0 + $0x10] sm:$0xff]
  %v37 = vld [vmem:[%s0 + $0x18] sm:$0xff]
  %v38 = vld [vmem:[%s0 + $0x20] sm:$0xff]
  %v39 = vld [vmem:[%s0 + $0x28] sm:$0xff]
  %v40 = vld [vmem:[%s0 + $0x30] sm:$0xff]
  %v41 = vld [vmem:[%s0 + $0x38] sm:$0xff]
  %v42 = vld [vmem:[%s0 + $0x40] sm:$0xff]
  %v43 = vld [vmem:[%s0 + $0x48] sm:$0xff]
  %v44 = vld [vmem:[%s0 + $0x50] sm:$0xff]
  %v45 = vld [vmem:[%s0 + $0x58] sm:$0xff]
  %v46 = vld [vmem:[%s0 + $0x60] sm:$0xff]
  %v47 = vld [vmem:[%s0 + $0x68] sm:$0xff]
  %v48 = vld [vmem:[%s0 + $0x70] sm:$0xff]
  %v49 = vld [vmem:[%s0 + $0x78] sm:$0xff]
  %v50 = vld [vmem:[%s2] sm:$0xff]
  %v51 = vld [vmem:[%s2 + $0x8] sm:$0xff]
  %v52 = vld [vmem:[%s2 + $0x10] sm:$0xff]
  %v53 = vld [vmem:[%s2 + $0x18] sm:$0xf]
  %v54 = vld [vmem:[%s1] sm:$0xff]
  %v55 = vld [vmem:[%s1 + $0x8] sm:$0xff]
  %v56 = vld [vmem:[%s1 + $0x10] sm:$0xff]
  %v57 = vld [vmem:[%s1 + $0x18] sm:$0xff]
  %v58 = vld [vmem:[%s1 + $0x20] sm:$0xff]
  %v59 = vld [vmem:[%s1 + $0x28] sm:$0xff]
  %v60 = vld [vmem:[%s1 + $0x30] sm:$0xff]
  %v61 = vld [vmem:[%s1 + $0x38] sm:$0xff]
  %v62 = vld [vmem:[%s1 + $0x40] sm:$0xff]
  %v63 = vld [vmem:[%s1 + $0x48] sm:$0xff]
  %v64 = vld [vmem:[%s1 + $0x50] sm:$0xff]
  %v65 = vld [vmem:[%s1 + $0x58] sm:$0xff]
  %v66 = vld [vmem:[%s1 + $0x60] sm:$0xff]
  %v67 = vld [vmem:[%s1 + $0x68] sm:$0xff]
  %v68 = vld [vmem:[%s1 + $0x70] sm:$0xff]
  %v69 = vld [vmem:[%s1 + $0x78] sm:$0xff]
  %v70 = vld [vmem:[%s3] sm:$0xf]
  %vm71 = vcmask 31744
  %v73 = vsel %vm71, %v54, 0
  %v76 = vsel %vm71, %v55, 0
  %v79 = vsel %vm71, %v56, 0
  %v82 = vsel %vm71, %v57, 0
  %v85 = vsel %vm71, %v58, 0
  %v88 = vsel %vm71, %v59, 0
  %v91 = vsel %vm71, %v60, 0
  %v94 = vsel %vm71, %v61, 0
  %v97 = vsel %vm71, %v62, 0
  %v100 = vsel %vm71, %v63, 0
  %v103 = vsel %vm71, %v64, 0
  %v106 = vsel %vm71, %v65, 0
  %v109 = vsel %vm71, %v66, 0
  %v112 = vsel %vm71, %v67, 0
  %v115 = vsel %vm71, %v68, 0
  %v118 = vsel %vm71, %v69, 0
  %vm120 = vcmask 1043456
  %v122 = vsel %vm120, %v70, 0
  %124 = vmatprep.subr.mxu0 0.0
  %125 = vmatpush1.msra.mxu0 %v122
  %126 = vmatprep.subr.mxu0 0.0
  %127 = vmatpush1.msra.mxu0 0.0
  %128 = vmatprep.subr.mxu0 0.0
  %129 = vmatpush1.msra.mxu0 0.0
  %130 = vmatprep.subr.mxu0 0.0
  %131 = vmatpush1.msra.mxu0 0.0
  %132 = vmatprep.subr.mxu0 0.0
  %133 = vmatpush1.msra.mxu0 0.0
  %134 = vmatprep.subr.mxu0 0.0
  %135 = vmatpush1.msra.mxu0 0.0
  %136 = vmatprep.subr.mxu0 0.0
  %137 = vmatpush1.msra.mxu0 0.0
  %138 = vmatprep.subr.mxu0 0.0
  %139 = vmatpush1.msra.mxu0 0.0
  %140 = vmatprep.subr.mxu0 0.0
  %141 = vmatpush1.msra.mxu0 0.0
  %142 = vmatprep.subr.mxu0 0.0
  %143 = vmatpush1.msra.mxu0 0.0
  %144 = vmatprep.subr.mxu0 0.0
  %145 = vmatpush1.msra.mxu0 0.0
  %146 = vmatprep.subr.mxu0 0.0
  %147 = vmatpush1.msra.mxu0 0.0
  %148 = vmatprep.subr.mxu0 0.0
  %149 = vmatpush1.msra.mxu0 0.0
  %150 = vmatprep.subr.mxu0 0.0
  %151 = vmatpush1.msra.mxu0 0.0
  %152 = vmatprep.subr.mxu0 0.0
  %153 = vmatpush1.msra.mxu0 0.0
  %154 = vmatprep.subr.mxu0 0.0
  %155 = vmatpush1.msra.mxu0 0.0
  %156 = vmatprep.subr.mxu0 0.0
  %157 = vmatpush1.msra.mxu0 0.0
  %158 = vmatprep.subr.mxu0 0.0
  %159 = vmatpush1.msra.mxu0 0.0
  %160 = vmatprep.subr.mxu0 0.0
  %161 = vmatpush1.msra.mxu0 0.0
  %162 = vmatprep.subr.mxu0 0.0
  %163 = vmatpush1.msra.mxu0 0.0
  %164 = vmatprep.subr.mxu0 0.0
  %165 = vmatpush1.msra.mxu0 0.0
  %166 = vmatprep.subr.mxu0 0.0
  %167 = vmatpush1.msra.mxu0 0.0
  %168 = vmatprep.subr.mxu0 0.0
  %169 = vmatpush1.msra.mxu0 0.0
  %170 = vmatprep.subr.mxu0 0.0
  %171 = vmatpush1.msra.mxu0 0.0
  %172 = vmatprep.subr.mxu0 0.0
  %173 = vmatpush1.msra.mxu0 0.0
  %174 = vmatprep.subr.mxu0 0.0
  %175 = vmatpush1.msra.mxu0 0.0
  %176 = vmatprep.subr.mxu0 0.0
  %177 = vmatpush1.msra.mxu0 0.0
  %178 = vmatprep.subr.mxu0 0.0
  %179 = vmatpush1.msra.mxu0 0.0
  %180 = vmatprep.subr.mxu0 0.0
  %181 = vmatpush1.msra.mxu0 0.0
  %182 = vmatprep.subr.mxu0 0.0
  %183 = vmatpush1.msra.mxu0 0.0
  %184 = vmatprep.subr.mxu0 0.0
  %185 = vmatpush1.msra.mxu0 0.0
  %186 = vmatprep.subr.mxu0 0.0
  %187 = vmatpush1.msra.mxu0 0.0
  %188 = vmatprep.mubr.f32.mxu0 0.0
  %189 = vmatmul.mubr.f32.gmra.mrb[0].mxu0 %v73
  %v190 = vpop.f32.mrb[0].mxu0
  %v191 = vadd.f32 0.0, %v190
  %v192 = vpop.f32.mrb[0].mxu0
  %193 = vmatprep.mubr.f32.mxu0 0.0
  %194 = vmatmul.mubr.f32.gmra.mrb[0].mxu0 %v76
  %v195 = vpop.f32.mrb[0].mxu0
  %v196 = vadd.f32 0.0, %v195
  %v197 = vpop.f32.mrb[0].mxu0
  %198 = vmatprep.mubr.f32.mxu0 0.0
  %199 = vmatmul.mubr.f32.gmra.mrb[0].mxu0 %v79
  %v200 = vpop.f32.mrb[0].mxu0
  %v201 = vadd.f32 0.0, %v200
  %v202 = vpop.f32.mrb[0].mxu0
  %203 = vmatprep.mubr.f32.mxu0 0.0
  %204 = vmatmul.mubr.f32.gmra.mrb[0].mxu0 %v82
  %v205 = vpop.f32.mrb[0].mxu0
  %v206 = vadd.f32 0.0, %v205
  %v207 = vpop.f32.mrb[0].mxu0
  %208 = vmatprep.mubr.f32.mxu0 0.0
  %209 = vmatmul.mubr.f32.gmra.mrb[0].mxu0 %v85
  %v210 = vpop.f32.mrb[0].mxu0
  %v211 = vadd.f32 0.0, %v210
  %v212 = vpop.f32.mrb[0].mxu0
  %213 = vmatprep.mubr.f32.mxu0 0.0
  %214 = vmatmul.mubr.f32.gmra.mrb[0].mxu0 %v88
  %v215 = vpop.f32.mrb[0].mxu0
  %v216 = vadd.f32 0.0, %v215
  %v217 = vpop.f32.mrb[0].mxu0
  %218 = vmatprep.mubr.f32.mxu0 0.0
  %219 = vmatmul.mubr.f32.gmra.mrb[0].mxu0 %v91
  %v220 = vpop.f32.mrb[0].mxu0
  %v221 = vadd.f32 0.0, %v220
  %v222 = vpop.f32.mrb[0].mxu0
  %223 = vmatprep.mubr.f32.mxu0 0.0
  %224 = vmatmul.mubr.f32.gmra.mrb[0].mxu0 %v94
  %v225 = vpop.f32.mrb[0].mxu0
  %v226 = vadd.f32 0.0, %v225
  %v227 = vpop.f32.mrb[0].mxu0
  %228 = vmatprep.mubr.f32.mxu0 0.0
  %229 = vmatmul.mubr.f32.gmra.mrb[0].mxu0 %v97
  %v230 = vpop.f32.mrb[0].mxu0
  %v231 = vadd.f32 0.0, %v230
  %v232 = vpop.f32.mrb[0].mxu0
  %233 = vmatprep.mubr.f32.mxu0 0.0
  %234 = vmatmul.mubr.f32.gmra.mrb[0].mxu0 %v100
  %v235 = vpop.f32.mrb[0].mxu0
  %v236 = vadd.f32 0.0, %v235
  %v237 = vpop.f32.mrb[0].mxu0
  %238 = vmatprep.mubr.f32.mxu0 0.0
  %239 = vmatmul.mubr.f32.gmra.mrb[0].mxu0 %v103
  %v240 = vpop.f32.mrb[0].mxu0
  %v241 = vadd.f32 0.0, %v240
  %v242 = vpop.f32.mrb[0].mxu0
  %243 = vmatprep.mubr.f32.mxu0 0.0
  %244 = vmatmul.mubr.f32.gmra.mrb[0].mxu0 %v106
  %v245 = vpop.f32.mrb[0].mxu0
  %v246 = vadd.f32 0.0, %v245
  %v247 = vpop.f32.mrb[0].mxu0
  %248 = vmatprep.mubr.f32.mxu0 0.0
  %249 = vmatmul.mubr.f32.gmra.mrb[0].mxu0 %v109
  %v250 = vpop.f32.mrb[0].mxu0
  %v251 = vadd.f32 0.0, %v250
  %v252 = vpop.f32.mrb[0].mxu0
  %253 = vmatprep.mubr.f32.mxu0 0.0
  %254 = vmatmul.mubr.f32.gmra.mrb[0].mxu0 %v112
  %v255 = vpop.f32.mrb[0].mxu0
  %v256 = vadd.f32 0.0, %v255
  %v257 = vpop.f32.mrb[0].mxu0
  %258 = vmatprep.mubr.f32.mxu0 0.0
  %259 = vmatmul.mubr.f32.gmra.mrb[0].mxu0 %v115
  %v260 = vpop.f32.mrb[0].mxu0
  %v261 = vadd.f32 0.0, %v260
  %v262 = vpop.f32.mrb[0].mxu0
  %263 = vmatprep.mubr.f32.mxu0 0.0
  %264 = vmatmul.mubr.f32.gmra.mrb[0].mxu0 %v118
  %v265 = vpop.f32.mrb[0].mxu0
  %v266 = vadd.f32 0.0, %v265
  %v267 = vpop.f32.mrb[0].mxu0
  %268 = vdwg.mxu0
  %vm269 = vcmask 228352
  %v271 = vsel %vm269, %v34, 0
  %v274 = vsel %vm269, %v35, 0
  %v277 = vsel %vm269, %v36, 0
  %v280 = vsel %vm269, %v37, 0
  %v283 = vsel %vm269, %v38, 0
  %v286 = vsel %vm269, %v39, 0
  %v289 = vsel %vm269, %v40, 0
  %v292 = vsel %vm269, %v41, 0
  %v295 = vsel %vm269, %v42, 0
  %v298 = vsel %vm269, %v43, 0
  %v301 = vsel %vm269, %v44, 0
  %v304 = vsel %vm269, %v45, 0
  %v307 = vsel %vm269, %v46, 0
  %v310 = vsel %vm269, %v47, 0
  %v313 = vsel %vm269, %v48, 0
  %v316 = vsel %vm269, %v49, 0
  %v319 = vsel %vm120, %v53, 0
  %321 = vmatprep.subr.mxu0 0.0
  %322 = vmatpush1.msra.mxu0 %v50
  %323 = vmatprep.subr.mxu0 0.0
  %324 = vmatpush1.msra.mxu0 %v51
  %325 = vmatprep.subr.mxu0 0.0
  %326 = vmatpush1.msra.mxu0 %v52
  %327 = vmatprep.subr.mxu0 0.0
  %328 = vmatpush1.msra.mxu0 %v319
  %329 = vmatprep.subr.mxu0 0.0
  %330 = vmatpush1.msra.mxu0 0.0
  %331 = vmatprep.subr.mxu0 0.0
  %332 = vmatpush1.msra.mxu0 0.0
  %333 = vmatprep.subr.mxu0 0.0
  %334 = vmatpush1.msra.mxu0 0.0
  %335 = vmatprep.subr.mxu0 0.0
  %336 = vmatpush1.msra.mxu0 0.0
  %337 = vmatprep.subr.mxu0 0.0
  %338 = vmatpush1.msra.mxu0 0.0
  %339 = vmatprep.subr.mxu0 0.0
  %340 = vmatpush1.msra.mxu0 0.0
  %341 = vmatprep.subr.mxu0 0.0
  %342 = vmatpush1.msra.mxu0 0.0
  %343 = vmatprep.subr.mxu0 0.0
  %344 = vmatpush1.msra.mxu0 0.0
  %345 = vmatprep.subr.mxu0 0.0
  %346 = vmatpush1.msra.mxu0 0.0
  %347 = vmatprep.subr.mxu0 0.0
  %348 = vmatpush1.msra.mxu0 0.0
  %349 = vmatprep.subr.mxu0 0.0
  %350 = vmatpush1.msra.mxu0 0.0
  %351 = vmatprep.subr.mxu0 0.0
  %352 = vmatpush1.msra.mxu0 0.0
  %353 = vmatprep.subr.mxu0 0.0
  %354 = vmatpush1.msra.mxu0 0.0
  %355 = vmatprep.subr.mxu0 0.0
  %356 = vmatpush1.msra.mxu0 0.0
  %357 = vmatprep.subr.mxu0 0.0
  %358 = vmatpush1.msra.mxu0 0.0
  %359 = vmatprep.subr.mxu0 0.0
  %360 = vmatpush1.msra.mxu0 0.0
  %361 = vmatprep.subr.mxu0 0.0
  %362 = vmatpush1.msra.mxu0 0.0
  %363 = vmatprep.subr.mxu0 0.0
  %364 = vmatpush1.msra.mxu0 0.0
  %365 = vmatprep.subr.mxu0 0.0
  %366 = vmatpush1.msra.mxu0 0.0
  %367 = vmatprep.subr.mxu0 0.0
  %368 = vmatpush1.msra.mxu0 0.0
  %369 = vmatprep.subr.mxu0 0.0
  %370 = vmatpush1.msra.mxu0 0.0
  %371 = vmatprep.subr.mxu0 0.0
  %372 = vmatpush1.msra.mxu0 0.0
  %373 = vmatprep.subr.mxu0 0.0
  %374 = vmatpush1.msra.mxu0 0.0
  %375 = vmatprep.subr.mxu0 0.0
  %376 = vmatpush1.msra.mxu0 0.0
  %377 = vmatprep.subr.mxu0 0.0
  %378 = vmatpush1.msra.mxu0 0.0
  %379 = vmatprep.subr.mxu0 0.0
  %380 = vmatpush1.msra.mxu0 0.0
  %381 = vmatprep.subr.mxu0 0.0
  %382 = vmatpush1.msra.mxu0 0.0
  %383 = vmatprep.subr.mxu0 0.0
  %384 = vmatpush1.msra.mxu0 0.0
  %385 = vmatprep.mubr.f32.mxu0 0.0
  %386 = vmatmul.mubr.f32.gmra.mrb[0].mxu0 %v271
  %v387 = vpop.f32.mrb[0].mxu0
  %v388 = vadd.f32 %v191, %v387
  %v389 = vpop.f32.mrb[0].mxu0
  %390 = vmatprep.mubr.f32.mxu0 0.0
  %391 = vmatmul.mubr.f32.gmra.mrb[0].mxu0 %v274
  %v392 = vpop.f32.mrb[0].mxu0
  %v393 = vadd.f32 %v196, %v392
  %v394 = vpop.f32.mrb[0].mxu0
  %395 = vmatprep.mubr.f32.mxu0 0.0
  %396 = vmatmul.mubr.f32.gmra.mrb[0].mxu0 %v277
  %v397 = vpop.f32.mrb[0].mxu0
  %v398 = vadd.f32 %v201, %v397
  %v399 = vpop.f32.mrb[0].mxu0
  %400 = vmatprep.mubr.f32.mxu0 0.0
  %401 = vmatmul.mubr.f32.gmra.mrb[0].mxu0 %v280
  %v402 = vpop.f32.mrb[0].mxu0
  %v403 = vadd.f32 %v206, %v402
  %v404 = vpop.f32.mrb[0].mxu0
  %405 = vmatprep.mubr.f32.mxu0 0.0
  %406 = vmatmul.mubr.f32.gmra.mrb[0].mxu0 %v283
  %v407 = vpop.f32.mrb[0].mxu0
  %v408 = vadd.f32 %v211, %v407
  %v409 = vpop.f32.mrb[0].mxu0
  %410 = vmatprep.mubr.f32.mxu0 0.0
  %411 = vmatmul.mubr.f32.gmra.mrb[0].mxu0 %v286
  %v412 = vpop.f32.mrb[0].mxu0
  %v413 = vadd.f32 %v216, %v412
  %v414 = vpop.f32.mrb[0].mxu0
  %415 = vmatprep.mubr.f32.mxu0 0.0
  %416 = vmatmul.mubr.f32.gmra.mrb[0].mxu0 %v289
  %v417 = vpop.f32.mrb[0].mxu0
  %v418 = vadd.f32 %v221, %v417
  %v419 = vpop.f32.mrb[0].mxu0
  %420 = vmatprep.mubr.f32.mxu0 0.0
  %421 = vmatmul.mubr.f32.gmra.mrb[0].mxu0 %v292
  %v422 = vpop.f32.mrb[0].mxu0
  %v423 = vadd.f32 %v226, %v422
  %v424 = vpop.f32.mrb[0].mxu0
  %425 = vmatprep.mubr.f32.mxu0 0.0
  %426 = vmatmul.mubr.f32.gmra.mrb[0].mxu0 %v295
  %v427 = vpop.f32.mrb[0].mxu0
  %v428 = vadd.f32 %v231, %v427
  %v429 = vpop.f32.mrb[0].mxu0
  %430 = vmatprep.mubr.f32.mxu0 0.0
  %431 = vmatmul.mubr.f32.gmra.mrb[0].mxu0 %v298
  %v432 = vpop.f32.mrb[0].mxu0
  %v433 = vadd.f32 %v236, %v432
  %v434 = vpop.f32.mrb[0].mxu0
  %435 = vmatprep.mubr.f32.mxu0 0.0
  %436 = vmatmul.mubr.f32.gmra.mrb[0].mxu0 %v301
  %v437 = vpop.f32.mrb[0].mxu0
  %v438 = vadd.f32 %v241, %v437
  %v439 = vpop.f32.mrb[0].mxu0
  %440 = vmatprep.mubr.f32.mxu0 0.0
  %441 = vmatmul.mubr.f32.gmra.mrb[0].mxu0 %v304
  %v442 = vpop.f32.mrb[0].mxu0
  %v443 = vadd.f32 %v246, %v442
  %v444 = vpop.f32.mrb[0].mxu0
  %445 = vmatprep.mubr.f32.mxu0 0.0
  %446 = vmatmul.mubr.f32.gmra.mrb[0].mxu0 %v307
  %v447 = vpop.f32.mrb[0].mxu0
  %v448 = vadd.f32 %v251, %v447
  %v449 = vpop.f32.mrb[0].mxu0
  %450 = vmatprep.mubr.f32.mxu0 0.0
  %451 = vmatmul.mubr.f32.gmra.mrb[0].mxu0 %v310
  %v452 = vpop.f32.mrb[0].mxu0
  %v453 = vadd.f32 %v256, %v452
  %v454 = vpop.f32.mrb[0].mxu0
  %455 = vmatprep.mubr.f32.mxu0 0.0
  %456 = vmatmul.mubr.f32.gmra.mrb[0].mxu0 %v313
  %v457 = vpop.f32.mrb[0].mxu0
  %v458 = vadd.f32 %v261, %v457
  %v459 = vpop.f32.mrb[0].mxu0
  %460 = vmatprep.mubr.f32.mxu0 0.0
  %461 = vmatmul.mubr.f32.gmra.mrb[0].mxu0 %v316
  %v462 = vpop.f32.mrb[0].mxu0
  %v463 = vadd.f32 %v266, %v462
  %v464 = vpop.f32.mrb[0].mxu0
  %465 = vdwg.mxu0
  %v466 = vld [vmem:[%s4] sm:$0x1]
  %v468 = vlaneseq
  %v469 = vshrl.u32 %v468, 7
  %v470 = vsub.s32 0, %v469
  %v471 = vrot.slane %v466, %v470
  %v473 = vadd.f32 %v388, %v471
  %v474 = vadd.f32 %v393, %v471
  %v475 = vadd.f32 %v398, %v471
  %v476 = vadd.f32 %v403, %v471
  %v477 = vadd.f32 %v408, %v471
  %v478 = vadd.f32 %v413, %v471
  %v479 = vadd.f32 %v418, %v471
  %v480 = vadd.f32 %v423, %v471
  %v481 = vadd.f32 %v428, %v471
  %v482 = vadd.f32 %v433, %v471
  %v483 = vadd.f32 %v438, %v471
  %v484 = vadd.f32 %v443, %v471
  %v485 = vadd.f32 %v448, %v471
  %v486 = vadd.f32 %v453, %v471
  %v487 = vadd.f32 %v458, %v471
  %v488 = vadd.f32 %v463, %v471
  %v489 = vmax.f32 %v473, 0.0
  %v490 = vmax.f32 %v474, 0.0
  %v491 = vmax.f32 %v475, 0.0
  %v492 = vmax.f32 %v476, 0.0
  %v493 = vmax.f32 %v477, 0.0
  %v494 = vmax.f32 %v478, 0.0
  %v495 = vmax.f32 %v479, 0.0
  %v496 = vmax.f32 %v480, 0.0
  %v497 = vmax.f32 %v481, 0.0
  %v498 = vmax.f32 %v482, 0.0
  %v499 = vmax.f32 %v483, 0.0
  %v500 = vmax.f32 %v484, 0.0
  %v501 = vmax.f32 %v485, 0.0
  %v502 = vmax.f32 %v486, 0.0
  %v503 = vmax.f32 %v487, 0.0
  %v504 = vmax.f32 %v488, 0.0
  %v505 = vld [vmem:[%s5] sm:$0xff]
  %v506 = vld [vmem:[%s5 + $0x8] sm:$0xff]
  %v507 = vld [vmem:[%s5 + $0x10] sm:$0xff]
  %v508 = vld [vmem:[%s5 + $0x18] sm:$0xff]
  %v509 = vld [vmem:[%s6] sm:$0x1]
  %v511 = vlaneseq
  %v512 = vshrl.u32 %v511, 7
  %v513 = vsub.s32 0, %v512
  %v514 = vrot.slane %v509, %v513
  %vm516 = vcmask 261120
  %v518 = vsel %vm516, %v489, 0
  %v521 = vsel %vm516, %v490, 0
  %v524 = vsel %vm516, %v491, 0
  %v527 = vsel %vm516, %v492, 0
  %v530 = vsel %vm516, %v493, 0
  %v533 = vsel %vm516, %v494, 0
  %v536 = vsel %vm516, %v495, 0
  %v539 = vsel %vm516, %v496, 0
  %v542 = vsel %vm516, %v497, 0
  %v545 = vsel %vm516, %v498, 0
  %v548 = vsel %vm516, %v499, 0
  %v551 = vsel %vm516, %v500, 0
  %v554 = vsel %vm516, %v501, 0
  %v557 = vsel %vm516, %v502, 0
  %v560 = vsel %vm516, %v503, 0
  %v563 = vsel %vm516, %v504, 0
  %565 = vmatprep.subr.mxu0 0.0
  %566 = vmatpush1.msra.mxu0 %v505
  %567 = vmatprep.subr.mxu0 0.0
  %568 = vmatpush1.msra.mxu0 %v506
  %569 = vmatprep.subr.mxu0 0.0
  %570 = vmatpush1.msra.mxu0 %v507
  %571 = vmatprep.subr.mxu0 0.0
  %572 = vmatpush1.msra.mxu0 %v508
  %573 = vmatprep.subr.mxu0 0.0
  %574 = vmatpush1.msra.mxu0 0.0
  %575 = vmatprep.subr.mxu0 0.0
  %576 = vmatpush1.msra.mxu0 0.0
  %577 = vmatprep.subr.mxu0 0.0
  %578 = vmatpush1.msra.mxu0 0.0
  %579 = vmatprep.subr.mxu0 0.0
  %580 = vmatpush1.msra.mxu0 0.0
  %581 = vmatprep.subr.mxu0 0.0
  %582 = vmatpush1.msra.mxu0 0.0
  %583 = vmatprep.subr.mxu0 0.0
  %584 = vmatpush1.msra.mxu0 0.0
  %585 = vmatprep.subr.mxu0 0.0
  %586 = vmatpush1.msra.mxu0 0.0
  %587 = vmatprep.subr.mxu0 0.0
  %588 = vmatpush1.msra.mxu0 0.0
  %589 = vmatprep.subr.mxu0 0.0
  %590 = vmatpush1.msra.mxu0 0.0
  %591 = vmatprep.subr.mxu0 0.0
  %592 = vmatpush1.msra.mxu0 0.0
  %593 = vmatprep.subr.mxu0 0.0
  %594 = vmatpush1.msra.mxu0 0.0
  %595 = vmatprep.subr.mxu0 0.0
  %596 = vmatpush1.msra.mxu0 0.0
  %597 = vmatprep.subr.mxu0 0.0
  %598 = vmatpush1.msra.mxu0 0.0
  %599 = vmatprep.subr.mxu0 0.0
  %600 = vmatpush1.msra.mxu0 0.0
  %601 = vmatprep.subr.mxu0 0.0
  %602 = vmatpush1.msra.mxu0 0.0
  %603 = vmatprep.subr.mxu0 0.0
  %604 = vmatpush1.msra.mxu0 0.0
  %605 = vmatprep.subr.mxu0 0.0
  %606 = vmatpush1.msra.mxu0 0.0
  %607 = vmatprep.subr.mxu0 0.0
  %608 = vmatpush1.msra.mxu0 0.0
  %609 = vmatprep.subr.mxu0 0.0
  %610 = vmatpush1.msra.mxu0 0.0
  %611 = vmatprep.subr.mxu0 0.0
  %612 = vmatpush1.msra.mxu0 0.0
  %613 = vmatprep.subr.mxu0 0.0
  %614 = vmatpush1.msra.mxu0 0.0
  %615 = vmatprep.subr.mxu0 0.0
  %616 = vmatpush1.msra.mxu0 0.0
  %617 = vmatprep.subr.mxu0 0.0
  %618 = vmatpush1.msra.mxu0 0.0
  %619 = vmatprep.subr.mxu0 0.0
  %620 = vmatpush1.msra.mxu0 0.0
  %621 = vmatprep.subr.mxu0 0.0
  %622 = vmatpush1.msra.mxu0 0.0
  %623 = vmatprep.subr.mxu0 0.0
  %624 = vmatpush1.msra.mxu0 0.0
  %625 = vmatprep.subr.mxu0 0.0
  %626 = vmatpush1.msra.mxu0 0.0
  %627 = vmatprep.subr.mxu0 0.0
  %628 = vmatpush1.msra.mxu0 0.0
  %629 = vmatprep.mubr.f32.mxu0 0.0
  %630 = vmatmul.mubr.f32.gmra.mrb[0].mxu0 %v518
  %v631 = vpop.f32.mrb[0].mxu0
  %v632 = vadd.f32 %v514, %v631
  %v633 = vpop.f32.mrb[0].mxu0
  %634 = vmatprep.mubr.f32.mxu0 0.0
  %635 = vmatmul.mubr.f32.gmra.mrb[0].mxu0 %v521
  %v636 = vpop.f32.mrb[0].mxu0
  %v637 = vadd.f32 %v514, %v636
  %v638 = vpop.f32.mrb[0].mxu0
  %639 = vmatprep.mubr.f32.mxu0 0.0
  %640 = vmatmul.mubr.f32.gmra.mrb[0].mxu0 %v524
  %v641 = vpop.f32.mrb[0].mxu0
  %v642 = vadd.f32 %v514, %v641
  %v643 = vpop.f32.mrb[0].mxu0
  %644 = vmatprep.mubr.f32.mxu0 0.0
  %645 = vmatmul.mubr.f32.gmra.mrb[0].mxu0 %v527
  %v646 = vpop.f32.mrb[0].mxu0
  %v647 = vadd.f32 %v514, %v646
  %v648 = vpop.f32.mrb[0].mxu0
  %649 = vmatprep.mubr.f32.mxu0 0.0
  %650 = vmatmul.mubr.f32.gmra.mrb[0].mxu0 %v530
  %v651 = vpop.f32.mrb[0].mxu0
  %v652 = vadd.f32 %v514, %v651
  %v653 = vpop.f32.mrb[0].mxu0
  %654 = vmatprep.mubr.f32.mxu0 0.0
  %655 = vmatmul.mubr.f32.gmra.mrb[0].mxu0 %v533
  %v656 = vpop.f32.mrb[0].mxu0
  %v657 = vadd.f32 %v514, %v656
  %v658 = vpop.f32.mrb[0].mxu0
  %659 = vmatprep.mubr.f32.mxu0 0.0
  %660 = vmatmul.mubr.f32.gmra.mrb[0].mxu0 %v536
  %v661 = vpop.f32.mrb[0].mxu0
  %v662 = vadd.f32 %v514, %v661
  %v663 = vpop.f32.mrb[0].mxu0
  %664 = vmatprep.mubr.f32.mxu0 0.0
  %665 = vmatmul.mubr.f32.gmra.mrb[0].mxu0 %v539
  %v666 = vpop.f32.mrb[0].mxu0
  %v667 = vadd.f32 %v514, %v666
  %v668 = vpop.f32.mrb[0].mxu0
  %669 = vmatprep.mubr.f32.mxu0 0.0
  %670 = vmatmul.mubr.f32.gmra.mrb[0].mxu0 %v542
  %v671 = vpop.f32.mrb[0].mxu0
  %v672 = vadd.f32 %v514, %v671
  %v673 = vpop.f32.mrb[0].mxu0
  %674 = vmatprep.mubr.f32.mxu0 0.0
  %675 = vmatmul.mubr.f32.gmra.mrb[0].mxu0 %v545
  %v676 = vpop.f32.mrb[0].mxu0
  %v677 = vadd.f32 %v514, %v676
  %v678 = vpop.f32.mrb[0].mxu0
  %679 = vmatprep.mubr.f32.mxu0 0.0
  %680 = vmatmul.mubr.f32.gmra.mrb[0].mxu0 %v548
  %v681 = vpop.f32.mrb[0].mxu0
  %v682 = vadd.f32 %v514, %v681
  %v683 = vpop.f32.mrb[0].mxu0
  %684 = vmatprep.mubr.f32.mxu0 0.0
  %685 = vmatmul.mubr.f32.gmra.mrb[0].mxu0 %v551
  %v686 = vpop.f32.mrb[0].mxu0
  %v687 = vadd.f32 %v514, %v686
  %v688 = vpop.f32.mrb[0].mxu0
  %689 = vmatprep.mubr.f32.mxu0 0.0
  %690 = vmatmul.mubr.f32.gmra.mrb[0].mxu0 %v554
  %v691 = vpop.f32.mrb[0].mxu0
  %v692 = vadd.f32 %v514, %v691
  %v693 = vpop.f32.mrb[0].mxu0
  %694 = vmatprep.mubr.f32.mxu0 0.0
  %695 = vmatmul.mubr.f32.gmra.mrb[0].mxu0 %v557
  %v696 = vpop.f32.mrb[0].mxu0
  %v697 = vadd.f32 %v514, %v696
  %v698 = vpop.f32.mrb[0].mxu0
  %699 = vmatprep.mubr.f32.mxu0 0.0
  %700 = vmatmul.mubr.f32.gmra.mrb[0].mxu0 %v560
  %v701 = vpop.f32.mrb[0].mxu0
  %v702 = vadd.f32 %v514, %v701
  %v703 = vpop.f32.mrb[0].mxu0
  %704 = vmatprep.mubr.f32.mxu0 0.0
  %705 = vmatmul.mubr.f32.gmra.mrb[0].mxu0 %v563
  %v706 = vpop.f32.mrb[0].mxu0
  %v707 = vadd.f32 %v514, %v706
  %v708 = vpop.f32.mrb[0].mxu0
  %709 = vdwg.mxu0
  %v710 = vmax.f32 %v632, 0.0
  %v711 = vmax.f32 %v637, 0.0
  %v712 = vmax.f32 %v642, 0.0
  %v713 = vmax.f32 %v647, 0.0
  %v714 = vmax.f32 %v652, 0.0
  %v715 = vmax.f32 %v657, 0.0
  %v716 = vmax.f32 %v662, 0.0
  %v717 = vmax.f32 %v667, 0.0
  %v718 = vmax.f32 %v672, 0.0
  %v719 = vmax.f32 %v677, 0.0
  %v720 = vmax.f32 %v682, 0.0
  %v721 = vmax.f32 %v687, 0.0
  %v722 = vmax.f32 %v692, 0.0
  %v723 = vmax.f32 %v697, 0.0
  %v724 = vmax.f32 %v702, 0.0
  %v725 = vmax.f32 %v707, 0.0
  %v726 = vld [vmem:[%s7] sm:$0x1]
  %v728 = vlaneseq
  %v729 = vshrl.u32 %v728, 7
  %v730 = vsub.s32 0, %v729
  %v731 = vrot.slane %v726, %v730
  %v733 = vmul.f32 %v710, %v731
  %v734 = vmul.f32 %v711, %v731
  %v735 = vmul.f32 %v712, %v731
  %v736 = vmul.f32 %v713, %v731
  %v737 = vmul.f32 %v714, %v731
  %v738 = vmul.f32 %v715, %v731
  %v739 = vmul.f32 %v716, %v731
  %v740 = vmul.f32 %v717, %v731
  %v741 = vmul.f32 %v718, %v731
  %v742 = vmul.f32 %v719, %v731
  %v743 = vmul.f32 %v720, %v731
  %v744 = vmul.f32 %v721, %v731
  %v745 = vmul.f32 %v722, %v731
  %v746 = vmul.f32 %v723, %v731
  %v747 = vmul.f32 %v724, %v731
  %v748 = vmul.f32 %v725, %v731
  %v749 = vsel %vm516, %v733, 0.0
  %750 = vadd.xlane.f32.xlu0 %v749
  %v751 = vpop.xlane.xlu0 %750
  %v752 = vsel %vm516, %v734, 0.0
  %753 = vadd.xlane.f32.xlu0 %v752
  %v754 = vpop.xlane.xlu0 %753
  %v755 = vsel %vm516, %v735, 0.0
  %756 = vadd.xlane.f32.xlu0 %v755
  %v757 = vpop.xlane.xlu0 %756
  %v758 = vsel %vm516, %v736, 0.0
  %759 = vadd.xlane.f32.xlu0 %v758
  %v760 = vpop.xlane.xlu0 %759
  %v761 = vsel %vm516, %v737, 0.0
  %762 = vadd.xlane.f32.xlu0 %v761
  %v763 = vpop.xlane.xlu0 %762
  %v764 = vsel %vm516, %v738, 0.0
  %765 = vadd.xlane.f32.xlu0 %v764
  %v766 = vpop.xlane.xlu0 %765
  %v767 = vsel %vm516, %v739, 0.0
  %768 = vadd.xlane.f32.xlu0 %v767
  %v769 = vpop.xlane.xlu0 %768
  %v770 = vsel %vm516, %v740, 0.0
  %771 = vadd.xlane.f32.xlu0 %v770
  %v772 = vpop.xlane.xlu0 %771
  %v773 = vsel %vm516, %v741, 0.0
  %774 = vadd.xlane.f32.xlu0 %v773
  %v775 = vpop.xlane.xlu0 %774
  %v776 = vsel %vm516, %v742, 0.0
  %777 = vadd.xlane.f32.xlu0 %v776
  %v778 = vpop.xlane.xlu0 %777
  %v779 = vsel %vm516, %v743, 0.0
  %780 = vadd.xlane.f32.xlu0 %v779
  %v781 = vpop.xlane.xlu0 %780
  %v782 = vsel %vm516, %v744, 0.0
  %783 = vadd.xlane.f32.xlu0 %v782
  %v784 = vpop.xlane.xlu0 %783
  %v785 = vsel %vm516, %v745, 0.0
  %786 = vadd.xlane.f32.xlu0 %v785
  %v787 = vpop.xlane.xlu0 %786
  %v788 = vsel %vm516, %v746, 0.0
  %789 = vadd.xlane.f32.xlu0 %v788
  %v790 = vpop.xlane.xlu0 %789
  %v791 = vsel %vm516, %v747, 0.0
  %792 = vadd.xlane.f32.xlu0 %v791
  %v793 = vpop.xlane.xlu0 %792
  %v794 = vsel %vm516, %v748, 0.0
  %795 = vadd.xlane.f32.xlu0 %v794
  %v796 = vpop.xlane.xlu0 %795
  %v797 = vld [vmem:[#allocation2] sm:$0x1]
  %v799 = vlaneseq
  %v800 = vshrl.u32 %v799, 7
  %v801 = vsub.s32 0, %v800
  %v802 = vrot.slane %v797, %v801
  %v804 = vadd.f32 %v751, %v802
  %v805 = vadd.f32 %v754, %v802
  %v806 = vadd.f32 %v757, %v802
  %v807 = vadd.f32 %v760, %v802
  %v808 = vadd.f32 %v763, %v802
  %v809 = vadd.f32 %v766, %v802
  %v810 = vadd.f32 %v769, %v802
  %v811 = vadd.f32 %v772, %v802
  %v812 = vadd.f32 %v775, %v802
  %v813 = vadd.f32 %v778, %v802
  %v814 = vadd.f32 %v781, %v802
  %v815 = vadd.f32 %v784, %v802
  %v816 = vadd.f32 %v787, %v802
  %v817 = vadd.f32 %v790, %v802
  %v818 = vadd.f32 %v793, %v802
  %v819 = vadd.f32 %v796, %v802
  %vm820 = vcmask 7168
  %821 = vst.msk [vmem:[%s9] sm:$0xff] %vm820, %v804
  %822 = vst.msk [vmem:[%s9 + $0x8] sm:$0xff] %vm820, %v805
  %823 = vst.msk [vmem:[%s9 + $0x10] sm:$0xff] %vm820, %v806
  %824 = vst.msk [vmem:[%s9 + $0x18] sm:$0xff] %vm820, %v807
  %825 = vst.msk [vmem:[%s9 + $0x20] sm:$0xff] %vm820, %v808
  %826 = vst.msk [vmem:[%s9 + $0x28] sm:$0xff] %vm820, %v809
  %827 = vst.msk [vmem:[%s9 + $0x30] sm:$0xff] %vm820, %v810
  %828 = vst.msk [vmem:[%s9 + $0x38] sm:$0xff] %vm820, %v811
  %829 = vst.msk [vmem:[%s9 + $0x40] sm:$0xff] %vm820, %v812
  %830 = vst.msk [vmem:[%s9 + $0x48] sm:$0xff] %vm820, %v813
  %831 = vst.msk [vmem:[%s9 + $0x50] sm:$0xff] %vm820, %v814
  %832 = vst.msk [vmem:[%s9 + $0x58] sm:$0xff] %vm820, %v815
  %833 = vst.msk [vmem:[%s9 + $0x60] sm:$0xff] %vm820, %v816
  %834 = vst.msk [vmem:[%s9 + $0x68] sm:$0xff] %vm820, %v817
  %835 = vst.msk [vmem:[%s9 + $0x70] sm:$0xff] %vm820, %v818
  %836 = vst.msk [vmem:[%s9 + $0x78] sm:$0xff] %vm820, %v819
  // Predicated region
  $region38: #{qvalue_forward.1} parent=0 // pred_check
    _
  $region39: #{qvalue_forward.1} parent=0 // pred_check_branch
    %838 = sbr.rel (0) target = $region41
  $region40: #{qvalue_forward.1} parent=0 // pred_region
    _
  $region41: #{qvalue_forward.1} parent=0 // pred_fallthru
    _
  // Predicated region
  $region42: #{qvalue_forward.1} parent=0 // pred_check
    _
  $region43: #{qvalue_forward.1} parent=0 // pred_check_branch
    %840 = sbr.rel (0) target = $region45
  $region44: #{qvalue_forward.1} parent=0 // pred_region
    _
  $region45: #{qvalue_forward.1} parent=0 // pred_fallthru
    _

</llo_original>
